<compile_context>
chip_gen: v7x
topology: tpu7x:2x2x1
jax: 0.10.0
libtpu: 0.0.40
codegen_flags: <defaults>
</compile_context>

<pallas_src>
import functools

import jax
import jax.numpy as jnp
from jax.experimental import pallas as pl
from jax.experimental.pallas import tpu as pltpu

_EPS = 1e-12  # F.normalize default


def _avg_readout_kernel(mask_ref, emb_ref, out_ref, acc_ref, rs_ref):
    k = pl.program_id(1)

    @pl.when(k == 0)
    def _init():
        acc_ref[...] = jnp.zeros_like(acc_ref)
        rs_ref[...] = jnp.zeros_like(rs_ref)

    mask = mask_ref[...]  # native dtype (bf16) straight into the MXU path
    emb = emb_ref[...]

    # Partial vsum for this K tile; f32 accumulation on the MXU.
    acc_ref[...] += jnp.dot(mask, emb, preferred_element_type=jnp.float32)
    # Partial row sums for this K tile (XLU reduce, hidden under the matmul).
    rs_ref[...] += jnp.sum(mask.astype(jnp.float32), axis=1, keepdims=True)

    @pl.when(k == pl.num_programs(1) - 1)
    def _finalize():
        inv_row = 1.0 / rs_ref[...]                      # (TM, 1), exact
        g = acc_ref[...] * inv_row                       # vsum / row_sum
        sq = jnp.sum(g * g, axis=1, keepdims=True)       # (TM, 1)
        # 1 / max(||g||, eps) == rsqrt(max(sq, eps^2)); rsqrt runs on the EUP.
        inv_norm = jax.lax.rsqrt(jnp.maximum(sq, _EPS * _EPS))
        out_ref[...] = (g * inv_norm).astype(out_ref.dtype)


def avg_readout(emb: jax.Array, mask: jax.Array, *, tm: int = 256,
                tk: int = 512) -> jax.Array:
    """emb: (N, D), mask: (M, N)  ->  (M, D) row-L2-normalized mean-pooled emb."""
    M, N = mask.shape
    N2, D = emb.shape
    assert N == N2, "mask cols must equal emb rows"

    tm = min(tm, M)
    tk = min(tk, N)
    assert M % tm == 0 and N % tk == 0, "shapes must divide the tile sizes"

    # mask values are 0/1 -> exact in bf16; halves the dominant HBM stream.
    # (Only do it when the tile is bf16-layout friendly.)
    if tm % 16 == 0 and tk % 128 == 0:
        mask = mask.astype(jnp.bfloat16)

    grid = (M // tm, N // tk)

    return pl.pallas_call(
        _avg_readout_kernel,
        out_shape=jax.ShapeDtypeStruct((M, D), jnp.float32),
        grid_spec=pltpu.PrefetchScalarGridSpec(
            num_scalar_prefetch=0,
            grid=grid,
            in_specs=[
                pl.BlockSpec((tm, tk), lambda i, k: (i, k)),   # mask tile
                pl.BlockSpec((tk, D), lambda i, k: (k, 0)),    # emb tile
            ],
            out_specs=pl.BlockSpec((tm, D), lambda i, k: (i, 0)),
            scratch_shapes=[
                pltpu.VMEM((tm, D), jnp.float32),   # vsum accumulator
                pltpu.VMEM((tm, 1), jnp.float32),   # row_sum accumulator
            ],
        ),
        compiler_params=pltpu.CompilerParams(
            # M tiles are independent -> shard across TCs on v7x; the N/K
            # reduction axis must stay sequential ("arbitrary") and last.
            dimension_semantics=("parallel", "arbitrary"),
        ),
    )(mask, emb)


def avg_readout_ref(emb: jax.Array, mask: jax.Array) -> jax.Array:
    """Pure-JAX reference mirroring the PyTorch forward."""
    vsum = mask @ emb
    row_sum = jnp.sum(mask, axis=1, keepdims=True)
    global_emb = vsum / row_sum
    norm = jnp.sqrt(jnp.sum(global_emb * global_emb, axis=1, keepdims=True))
    return global_emb / jnp.maximum(norm, _EPS)


if __name__ == "__main__":
    key = jax.random.PRNGKey(0)
    k_emb, k_mask = jax.random.split(key)

    # Small but tiling-friendly shapes: M graphs, N nodes, D hidden.
    M, N, D = 32, 512, 128
    TM, TK = 16, 128  # grid = (2, 4): exercises both the parallel M axis
                      # and the K reduction loop.

    emb = jax.random.normal(k_emb, (N, D), dtype=jnp.float32)
    # Membership-style 0/1 mask with strictly positive row sums (matches the
    # dense view of the sparse pooling matrix in the original use).
    mask = (jax.random.uniform(k_mask, (M, N)) > 0.5).astype(jnp.float32)
    mask = mask.at[:, 0].set(1.0)  # guarantee no zero rows

    run = jax.jit(functools.partial(avg_readout, tm=TM, tk=TK))
    out = jax.block_until_ready(run(emb, mask))

    ref = avg_readout_ref(emb, mask)
    assert out.shape == (M, D)
    assert bool(jnp.allclose(out, ref, atol=1e-4, rtol=1e-4)), (
        float(jnp.max(jnp.abs(out - ref))))

    print("KERNEL_OK")
</pallas_src>

<mosaic_0001>
module attributes {stable_mosaic.version = 11 : i64} {
  func.func @_avg_readout_kernel(%arg0: i32, %arg1: i32, %arg2: memref<16x128xbf16, #tpu.memory_space<vmem>>, %arg3: memref<128x128xf32, #tpu.memory_space<vmem>>, %arg4: memref<16x128xf32, #tpu.memory_space<vmem>>, %arg5: memref<16x128xf32, #tpu.memory_space<vmem>>, %arg6: memref<16x1xf32, #tpu.memory_space<vmem>>) attributes {dimension_semantics = [#tpu.dimension_semantics<parallel>, #tpu.dimension_semantics<arbitrary>], iteration_bounds = array<i64: 2, 4>, scalar_prefetch = 0 : i64, scratch_operands = 2 : i64, tpu.core_type = #tpu.core_type<tc>, window_params = [{transform_indices = @transform_0, window_bounds = array<i64: 16, 128>}, {transform_indices = @transform_1, window_bounds = array<i64: 128, 128>}, {transform_indices = @transform_2, window_bounds = array<i64: 16, 128>}]} {
    %c0_i32 = arith.constant 0 : i32
    %0 = arith.cmpi eq, %arg1, %c0_i32 : i32
    %1 = arith.extui %0 : i1 to i32
    %c0_i32_0 = arith.constant 0 : i32
    %2 = arith.cmpi ne, %1, %c0_i32_0 : i32
    scf.if %2 {
      %cst_14 = arith.constant 0.000000e+00 : f32
      %18 = vector.broadcast %cst_14 : f32 to vector<16x128xf32>
      %c0_15 = arith.constant 0 : index
      %c0_16 = arith.constant 0 : index
      %19 = vector.load %arg5[%c0_15, %c0_16] : memref<16x128xf32, #tpu.memory_space<vmem>>, vector<16x128xf32>
      tpu.vector_store %arg5[%c0_15, %c0_16], %18 {strides = array<i32>} : memref<16x128xf32, #tpu.memory_space<vmem>>, vector<16x128xf32>,
      %cst_17 = arith.constant 0.000000e+00 : f32
      %20 = vector.broadcast %cst_17 : f32 to vector<16x1xf32>
      %c0_18 = arith.constant 0 : index
      %c0_19 = arith.constant 0 : index
      %21 = vector.load %arg6[%c0_18, %c0_19] : memref<16x1xf32, #tpu.memory_space<vmem>>, vector<16x1xf32>
      tpu.vector_store %arg6[%c0_18, %c0_19], %20 {strides = array<i32>} : memref<16x1xf32, #tpu.memory_space<vmem>>, vector<16x1xf32>,
    } else {
    }
    %c0 = arith.constant 0 : index
    %c0_1 = arith.constant 0 : index
    %3 = vector.load %arg2[%c0, %c0_1] : memref<16x128xbf16, #tpu.memory_space<vmem>>, vector<16x128xbf16>
    %c0_2 = arith.constant 0 : index
    %c0_3 = arith.constant 0 : index
    %4 = vector.load %arg3[%c0_2, %c0_3] : memref<128x128xf32, #tpu.memory_space<vmem>>, vector<128x128xf32>
    %c0_4 = arith.constant 0 : index
    %c0_5 = arith.constant 0 : index
    %5 = vector.load %arg5[%c0_4, %c0_5] : memref<16x128xf32, #tpu.memory_space<vmem>>, vector<16x128xf32>
    %cst = arith.constant dense<0.000000e+00> : vector<16x128xf32>
    %6 = tpu.matmul %3, %4, %cst {dimension_numbers = #tpu.dot_dimension_numbers<[1], [0], [0], [1], [0, 0, 1, 1], [], []>} : vector<16x128xbf16>, vector<128x128xf32>, vector<16x128xf32> -> vector<16x128xf32>
    %7 = arith.addf %5, %6 : vector<16x128xf32>
    %c0_6 = arith.constant 0 : index
    %c0_7 = arith.constant 0 : index
    %8 = vector.load %arg5[%c0_6, %c0_7] : memref<16x128xf32, #tpu.memory_space<vmem>>, vector<16x128xf32>
    tpu.vector_store %arg5[%c0_6, %c0_7], %7 {strides = array<i32>} : memref<16x128xf32, #tpu.memory_space<vmem>>, vector<16x128xf32>,
    %c0_8 = arith.constant 0 : index
    %c0_9 = arith.constant 0 : index
    %9 = vector.load %arg6[%c0_8, %c0_9] : memref<16x1xf32, #tpu.memory_space<vmem>>, vector<16x1xf32>
    %10 = arith.extf %3 : vector<16x128xbf16> to vector<16x128xf32>
    %cst_10 = arith.constant dense<0.000000e+00> : vector<16xf32>
    %11 = vector.multi_reduction <add>, %10, %cst_10 [1] : vector<16x128xf32> to vector<16xf32>
    %12 = vector.shape_cast %11 : vector<16xf32> to vector<16x1xf32>
    %13 = arith.addf %9, %12 : vector<16x1xf32>
    %c0_11 = arith.constant 0 : index
    %c0_12 = arith.constant 0 : index
    %14 = vector.load %arg6[%c0_11, %c0_12] : memref<16x1xf32, #tpu.memory_space<vmem>>, vector<16x1xf32>
    tpu.vector_store %arg6[%c0_11, %c0_12], %13 {strides = array<i32>} : memref<16x1xf32, #tpu.memory_space<vmem>>, vector<16x1xf32>,
    %c3_i32 = arith.constant 3 : i32
    %15 = arith.cmpi eq, %arg1, %c3_i32 : i32
    %16 = arith.extui %15 : i1 to i32
    %c0_i32_13 = arith.constant 0 : i32
    %17 = arith.cmpi ne, %16, %c0_i32_13 : i32
    scf.if %17 {
      %c0_14 = arith.constant 0 : index
      %c0_15 = arith.constant 0 : index
      %18 = vector.load %arg6[%c0_14, %c0_15] : memref<16x1xf32, #tpu.memory_space<vmem>>, vector<16x1xf32>
      %cst_16 = arith.constant 1.000000e+00 : f32
      %19 = vector.broadcast %cst_16 : f32 to vector<16x1xf32>
      %20 = arith.divf %19, %18 : vector<16x1xf32>
      %c0_17 = arith.constant 0 : index
      %c0_18 = arith.constant 0 : index
      %21 = vector.load %arg5[%c0_17, %c0_18] : memref<16x128xf32, #tpu.memory_space<vmem>>, vector<16x128xf32>
      %22 = vector.broadcast %20 : vector<16x1xf32> to vector<16x128xf32>
      %23 = arith.mulf %21, %22 : vector<16x128xf32>
      %24 = arith.mulf %23, %23 : vector<16x128xf32>
      %cst_19 = arith.constant dense<0.000000e+00> : vector<16xf32>
      %25 = vector.multi_reduction <add>, %24, %cst_19 [1] : vector<16x128xf32> to vector<16xf32>
      %26 = vector.shape_cast %25 : vector<16xf32> to vector<16x1xf32>
      %cst_20 = arith.constant 1.000000e-24 : f32
      %27 = vector.broadcast %cst_20 : f32 to vector<16x1xf32>
      %28 = arith.maximumf %26, %27 : vector<16x1xf32>
      %29 = math.rsqrt %28 : vector<16x1xf32>
      %30 = vector.broadcast %29 : vector<16x1xf32> to vector<16x128xf32>
      %31 = arith.mulf %23, %30 : vector<16x128xf32>
      %c0_21 = arith.constant 0 : index
      %c0_22 = arith.constant 0 : index
      %32 = vector.load %arg4[%c0_21, %c0_22] : memref<16x128xf32, #tpu.memory_space<vmem>>, vector<16x128xf32>
      tpu.vector_store %arg4[%c0_21, %c0_22], %31 {strides = array<i32>} : memref<16x128xf32, #tpu.memory_space<vmem>>, vector<16x128xf32>,
    } else {
    }
    return
  }
  func.func @transform_0(%arg0: i32, %arg1: i32) -> (i32, i32) {
    %c0_i32 = arith.constant 0 : i32
    return %arg0, %arg1 : i32, i32
  }
  func.func @transform_1(%arg0: i32, %arg1: i32) -> (i32, i32) {
    %c0_i32 = arith.constant 0 : i32
    %c0_i32_0 = arith.constant 0 : i32
    return %arg1, %c0_i32 : i32, i32
  }
  func.func @transform_2(%arg0: i32, %arg1: i32) -> (i32, i32) {
    %c0_i32 = arith.constant 0 : i32
    %c0_i32_0 = arith.constant 0 : i32
    return %arg0, %c0_i32 : i32, i32
  }
}

</mosaic_0001>

<llo_original>
// kernel: avg_readout.1
$region0: #{avg_readout.1}
  #allocation0 [shape = 'u32[]', space=smem, size = 0x4, offset = 0x4, fixed_abs, tag = 'smem constant byte address 0x4 - core index']
  #allocation1 [shape = 'u32[144,128]{1,0:T(1,128)}', space=vmem, size = 0x12000, scoped, tag = 'internal scratch']
  #allocation2 [shape = 'f32[16,128]{1,0:T(8,128)}', space=vmem, size = 0x2000, scoped, tag = 'scratch operand']
  #allocation3 [shape = 'f32[16,1]{1,0:T(8,128)}', space=vmem, size = 0x2000, scoped, tag = 'scratch operand']
  %s0 = inlined_call_operand.vmem [shape: bf16[32,512], index: 0, kind: input, shape index: {}]
  %s1 = inlined_call_operand.hbm [shape: f32[512,128], index: 1, kind: input, shape index: {}]
  %s2 = inlined_call_operand.hbm [shape: f32[32,128], index: 2, kind: output, shape index: {}]
  %s3 = sld [smem:[#allocation0]]
  $region94: #{avg_readout.1} parent=0
    _
  %s5 = ssub.s32 1, %s3
  %s6 = scalar_select 0, %s5, %s3
  $region1: #{avg_readout.1} parent=0
    #allocation4 [shape = 'u8[8192]{0}', space=vmem, size = 0x2000, scoped, tag = 'input window, operand 0']
    #allocation5 [shape = 'u8[131072]{0}', space=vmem, size = 0x20000, scoped, tag = 'input window, operand 1']
    #allocation6 [shape = 's32[2]{0}', space=sflag, size = 0x8, scoped, tag = 'scoped memory for avg_readout.1']
    #allocation7 [shape = 's32[2]{0}', space=sflag, size = 0x8, scoped, tag = 'scoped memory for avg_readout.1']
    #allocation8 [shape = 'u8[16384]{0}', space=vmem, size = 0x4000, scoped, tag = 'output window, operand 0']
    %7 = vsyncpa [#allocation6], 0
    %s8 = scalar_lea.sflag [#allocation6], 1
    %9 = vsyncpa %s8, 0
    %10 = vsyncpa [#allocation7], 0
    %s11 = scalar_lea.sflag [#allocation7], 1
    %12 = vsyncpa %s11, 0
    loop: start=0, step=1, limit=10
    $region2: #{avg_readout.1} parent=1 // loop_pre_header
      _
    $region3: #{avg_readout.1} parent=1 // loop_header
      %s14 = sphi 0, %s18
      %p15 = scmp.ge.s32.totalorder %s14, 10
      %s21 = sphi 0, %s33
      %s22 = sphi 0, %s29
      %s23 = sphi 0, %s21
      %s24 = sphi 0, %s22
      %s25 = sphi 0, %s23
      %s26 = sphi 0, %s24
      %s38 = sphi 0, %s40
      %s41 = sphi 0, %s38
      %s42 = sphi 0, %s41
      %s58 = sphi 0, %s42
      %s64 = sphi 0, %s66
      %s67 = sphi 0, %s64
      %s68 = sphi 0, %s67
      %s84 = sphi 0, %s68
      %s90 = sphi 0, %s92
      %s93 = sphi 0, %s90
      %s94 = sphi 0, %s93
      %s110 = sphi 0, %s94
    $region4: #{avg_readout.1} parent=1 // loop_header_branch
      %17 = sbr.rel (%p15) target = $region8
    $region5: #{avg_readout.1} parent=1 // loop_body
      %s19 = ssub.s32 %s14, 1
      %s20 = ssub.s32 %s14, 2
      %s27 = sadd.s32 1, %s22
      %p28 = scmp.ge.s32.totalorder %s27, 4
      %s29 = scalar_select %p28, 0, %s27
      %s30 = sadd.s32 1, %s21
      %s31 = scalar_select %p28, %s30, %s21
      %p32 = scmp.ge.s32.totalorder %s31, 2
      %s33 = scalar_select %p32, 0, %s31
      %s34 = ssub.s32 %s21, %s33
      %s35 = ssub.s32 %s22, %s29
      %s36 = sor.u32 %s34, %s35
      %p37 = scmp.eq.s32.totalorder %s36, 0
      %s39 = sadd.s32 %s38, 1
      %s40 = scalar_select %p37, %s38, %s39
      %p43 = pneg %p37
      %p44 = scmp.eq.s32.totalorder %s14, 7
      %p45 = por %p43, %p44
      %p46 = scmp.ne.s32.totalorder %s38, %s41
      %p47 = scmp.eq.s32.totalorder %s14, 0
      %p48 = por %p46, %p47
      %p49 = scmp.ne.s32.totalorder %s38, %s41
      %p50 = scmp.eq.s32.totalorder %s19, 7
      %p51 = por %p49, %p50
      %p52 = scmp.ne.s32.totalorder %s41, %s42
      %p53 = scmp.eq.s32.totalorder %s19, 0
      %p54 = por %p52, %p53
      %p55 = scmp.ne.s32.totalorder %s41, %s42
      %p56 = scmp.eq.s32.totalorder %s20, 7
      %p57 = por %p55, %p56
      %p59 = scmp.ne.s32.totalorder %s42, %s58
      %p60 = scmp.eq.s32.totalorder %s20, 0
      %p61 = por %p59, %p60
      %s62 = ssub.s32 %s22, %s29
      %p63 = scmp.eq.s32.totalorder %s62, 0
      %s65 = sadd.s32 %s64, 1
      %s66 = scalar_select %p63, %s64, %s65
      %p69 = pneg %p63
      %p70 = scmp.eq.s32.totalorder %s14, 7
      %p71 = por %p69, %p70
      %p72 = scmp.ne.s32.totalorder %s64, %s67
      %p73 = scmp.eq.s32.totalorder %s14, 0
      %p74 = por %p72, %p73
      %p75 = scmp.ne.s32.totalorder %s64, %s67
      %p76 = scmp.eq.s32.totalorder %s19, 7
      %p77 = por %p75, %p76
      %p78 = scmp.ne.s32.totalorder %s67, %s68
      %p79 = scmp.eq.s32.totalorder %s19, 0
      %p80 = por %p78, %p79
      %p81 = scmp.ne.s32.totalorder %s67, %s68
      %p82 = scmp.eq.s32.totalorder %s20, 7
      %p83 = por %p81, %p82
      %p85 = scmp.ne.s32.totalorder %s68, %s84
      %p86 = scmp.eq.s32.totalorder %s20, 0
      %p87 = por %p85, %p86
      %s88 = ssub.s32 %s21, %s33
      %p89 = scmp.eq.s32.totalorder %s88, 0
      %s91 = sadd.s32 %s90, 1
      %s92 = scalar_select %p89, %s90, %s91
      %p95 = pneg %p89
      %p96 = scmp.eq.s32.totalorder %s14, 7
      %p97 = por %p95, %p96
      %p98 = scmp.ne.s32.totalorder %s90, %s93
      %p99 = scmp.eq.s32.totalorder %s14, 0
      %p100 = por %p98, %p99
      %p101 = scmp.ne.s32.totalorder %s90, %s93
      %p102 = scmp.eq.s32.totalorder %s19, 7
      %p103 = por %p101, %p102
      %p104 = scmp.ne.s32.totalorder %s93, %s94
      %p105 = scmp.eq.s32.totalorder %s19, 0
      %p106 = por %p104, %p105
      %p107 = scmp.ne.s32.totalorder %s93, %s94
      %p108 = scmp.eq.s32.totalorder %s20, 7
      %p109 = por %p107, %p108
      %p111 = scmp.ne.s32.totalorder %s94, %s110
      %p112 = scmp.eq.s32.totalorder %s20, 0
      %p113 = por %p111, %p112
      %p114 = scmp.le.s32.totalorder 1, %s14
      %p115 = scmp.lt.s32.totalorder %s14, 9
      %p116 = pnand %p114, %p115
      %p117 = pneg %p116
      // Predicated region
      $region9: #{avg_readout.1} parent=5 // pred_check
        _
      $region10: #{avg_readout.1} parent=5 // pred_check_branch
        %119 = sbr.rel (%p116) target = $region12
      $region11: #{avg_readout.1} parent=5 // pred_region
        %s120 = ssub.s32 %s14, 1
      $region12: #{avg_readout.1} parent=5 // pred_fallthru
        _
      %p121 = scmp.lt.s32.totalorder %s14, 8
      // Predicated region
      $region13: #{avg_readout.1} parent=5 // pred_check
        %p122 = pneg %p121
      $region14: #{avg_readout.1} parent=5 // pred_check_branch
        %124 = sbr.rel (%p122) target = $region16
      $region15: #{avg_readout.1} parent=5 // pred_region
        // Predicated region
        $region17: #{avg_readout.1} parent=15 // pred_check
          %p125 = pneg %p48
        $region18: #{avg_readout.1} parent=15 // pred_check_branch
          %127 = sbr.rel (%p125) target = $region20
        $region19: #{avg_readout.1} parent=15 // pred_region
          %s128 = sand.u32 %s38, 1
          %s129 = sand.u32 %s38, 1
          %s130 = smul.addr %s129, 8
          %s131 = scalar_lea.vmem [#allocation4], %s130
          %s132 = smul.u32 2, %s21
          %s133 = smul.addr %s132, 4
          %s134 = sadd.s32 %s22, %s133
          %s135 = smul.addr %s134, 4
          %s136 = scalar_lea.vmem %s0, %s135
          // Predicated region
          $region21: #{avg_readout.1} parent=19 // pred_check
            _
          $region22: #{avg_readout.1} parent=19 // pred_check_branch
            %138 = sbr.rel (0) target = $region24
          $region23: #{avg_readout.1} parent=19 // pred_region
            // Predicated region
            $region25: #{avg_readout.1} parent=23 // pred_check
              _
            $region26: #{avg_readout.1} parent=23 // pred_check_branch
              %140 = sbr.rel target = $region28
            $region27: #{avg_readout.1} parent=23 // pred_region
              // Predicated region
              $region40: #{avg_readout.1} parent=27 // pred_check
                _
              $region41: #{avg_readout.1} parent=27 // pred_check_branch
                %157 = sbr.rel (0) target = $region43
              $region42: #{avg_readout.1} parent=27 // pred_region
                loop: start=0, step=1, limit=1
                $region44: #{avg_readout.1} parent=42 // loop_pre_header
                  _
                $region45: #{avg_readout.1} parent=42 // loop_header
                  %s159 = sphi 0, %s163
                  %p160 = scmp.ge.s32.totalorder %s159, 1
                  %s164 = sphi %s136, %s136
                  %s165 = sphi %s131, %s131
                $region46: #{avg_readout.1} parent=42 // loop_header_branch
                  %162 = sbr.rel (%p160) target = $region50
                $region47: #{avg_readout.1} parent=42 // loop_body
                  _
                $region48: #{avg_readout.1} parent=42 // loop_footer
                  %s163 = sadd.s32 1, %s159
                $region49: #{avg_readout.1} parent=42 // loop_footer_branch
                  %158 = sbr.rel target = $region45
                $region50: #{avg_readout.1} parent=42 // loop_exit
                  _
                loop: start=0, step=1, limit=1
                $region51: #{avg_readout.1} parent=42 // loop_pre_header
                  _
                $region52: #{avg_readout.1} parent=42 // loop_header
                  %s168 = sphi 0, %s172
                  %p169 = scmp.ge.s32.totalorder %s168, 1
                  %s173 = sphi %s136, %s136
                  %s174 = sphi %s131, %s131
                $region53: #{avg_readout.1} parent=42 // loop_header_branch
                  %171 = sbr.rel (%p169) target = $region57
                $region54: #{avg_readout.1} parent=42 // loop_body
                  %v175 = vld [vmem:[%s173] sm:$0xf]
                  %176 = vst [vmem:[%s174] sm:$0xf] %v175
                  %v177 = vld [vmem:[%s173 + $0x10] sm:$0xf]
                  %178 = vst [vmem:[%s174 + $0x4] sm:$0xf] %v177
                $region55: #{avg_readout.1} parent=42 // loop_footer
                  %s172 = sadd.s32 1, %s168
                $region56: #{avg_readout.1} parent=42 // loop_footer_branch
                  %167 = sbr.rel target = $region52
                $region57: #{avg_readout.1} parent=42 // loop_exit
                  _
              $region43: #{avg_readout.1} parent=27 // pred_fallthru
                _
            $region28: #{avg_readout.1} parent=23 // pred_fallthru
              _
            // Predicated region
            $region29: #{avg_readout.1} parent=23 // pred_check
              _
            $region30: #{avg_readout.1} parent=23 // pred_check_branch
              %142 = sbr.rel (0) target = $region32
            $region31: #{avg_readout.1} parent=23 // pred_region
              loop: start=0, step=1, limit=1
              $region33: #{avg_readout.1} parent=31 // loop_pre_header
                _
              $region34: #{avg_readout.1} parent=31 // loop_header
                %s145 = sphi 0, %s149
                %p146 = scmp.ge.s32.totalorder %s145, 1
                %s150 = sphi %s136, %s136
                %s151 = sphi %s131, %s131
              $region35: #{avg_readout.1} parent=31 // loop_header_branch
                %148 = sbr.rel (%p146) target = $region39
              $region36: #{avg_readout.1} parent=31 // loop_body
                %v152 = vld [vmem:[%s150] sm:$0xf]
                %153 = vst [vmem:[%s151] sm:$0xf] %v152
                %v154 = vld [vmem:[%s150 + $0x10] sm:$0xf]
                %155 = vst [vmem:[%s151 + $0x4] sm:$0xf] %v154
              $region37: #{avg_readout.1} parent=31 // loop_footer
                %s149 = sadd.s32 1, %s145
              $region38: #{avg_readout.1} parent=31 // loop_footer_branch
                %144 = sbr.rel target = $region34
              $region39: #{avg_readout.1} parent=31 // loop_exit
                _
            $region32: #{avg_readout.1} parent=23 // pred_fallthru
              _
          $region24: #{avg_readout.1} parent=19 // pred_fallthru
            _
          %179 = vnop
        $region20: #{avg_readout.1} parent=15 // pred_fallthru
          _
        // Predicated region
        $region58: #{avg_readout.1} parent=15 // pred_check
          %p180 = pneg %p74
        $region59: #{avg_readout.1} parent=15 // pred_check_branch
          %182 = sbr.rel (%p180) target = $region61
        $region60: #{avg_readout.1} parent=15 // pred_region
          %s183 = sand.u32 %s64, 1
          %s184 = scalar_lea.sflag [#allocation6], %s183
          %s185 = sand.u32 %s64, 1
          %s186 = smul.addr %s185, 128
          %s187 = scalar_lea.vmem [#allocation5], %s186
          %s188 = smul.u32 16, %s22
          %s190 = ssub.s32 2048, 2048
          %191 = vsyncadd %s184, %s190
          %s192 = smul.addr %s188, 128
          %s193 = scalar_lea.hbm %s1, %s192
          %s194 = sshll.u32 %s187, 4
          %s195 = int_to_ptr.vmem [resolvable:$true] %s194
          %200 = dma.hbm_to_vmem [thread:$0]  %s193, 2048, %s195, %s184, 128, 128, 8
        $region61: #{avg_readout.1} parent=15 // pred_fallthru
          _
      $region16: #{avg_readout.1} parent=5 // pred_fallthru
        _
      %p201 = scmp.le.s32.totalorder 1, %s14
      %p202 = scmp.lt.s32.totalorder %s14, 9
      %p203 = pnand %p201, %p202
      %p204 = pneg %p203
      // Predicated region
      $region62: #{avg_readout.1} parent=5 // pred_check
        _
      $region63: #{avg_readout.1} parent=5 // pred_check_branch
        %206 = sbr.rel (%p203) target = $region65
      $region64: #{avg_readout.1} parent=5 // pred_region
        %s207 = ssub.s32 %s14, 1
        %s208 = sand.u32 %s41, 1
        %s209 = sand.u32 %s41, 1
        %s210 = smul.addr %s209, 8
        %s211 = scalar_lea.vmem [#allocation4], %s210
        // Predicated region
        $region66: #{avg_readout.1} parent=64 // pred_check
          %p212 = pneg %p54
        $region67: #{avg_readout.1} parent=64 // pred_check_branch
          %214 = sbr.rel (%p212) target = $region69
        $region68: #{avg_readout.1} parent=64 // pred_region
          _
        $region69: #{avg_readout.1} parent=64 // pred_fallthru
          _
        %s215 = sand.u32 %s67, 1
        %s216 = scalar_lea.sflag [#allocation6], %s215
        %s217 = sand.u32 %s67, 1
        %s218 = smul.addr %s217, 128
        %s219 = scalar_lea.vmem [#allocation5], %s218
        // Predicated region
        $region70: #{avg_readout.1} parent=64 // pred_check
          %p220 = pneg %p80
        $region71: #{avg_readout.1} parent=64 // pred_check_branch
          %222 = sbr.rel (%p220) target = $region73
        $region72: #{avg_readout.1} parent=64 // pred_region
          %223 = dma.done %s216, 2048
        $region73: #{avg_readout.1} parent=64 // pred_fallthru
          _
        %s224 = sand.u32 %s41, 1
        %s225 = sand.u32 %s41, 1
        %s226 = smul.addr %s225, 8
        %s227 = scalar_lea.vmem [#allocation4], %s226
        %p228 = pneg %p54
        %p229 = pneg %p51
        %s230 = sand.u32 %s67, 1
        %s231 = scalar_lea.sflag [#allocation6], %s230
        %s232 = sand.u32 %s67, 1
        %s233 = smul.addr %s232, 128
        %s234 = scalar_lea.vmem [#allocation5], %s233
        %p235 = pneg %p80
        %p236 = pneg %p77
        %p237 = pneg %p106
        %p238 = pneg %p103
        %s239 = sand.u32 %s93, 1
        %s240 = scalar_lea.sflag [#allocation7], %s239
        %s241 = sand.u32 %s93, 1
        %s242 = smul.addr %s241, 16
        %s243 = scalar_lea.vmem [#allocation8], %s242
        %s244 = smul.u32 2, %s23
        %s245 = smul.u32 16, %s24
        %s246 = smul.u32 2, %s23
        %p248 = scmp.eq.s32.totalorder %s24, 0
        // Predicated region
        $region74: #{avg_readout.1} parent=64 // pred_check
          %p249 = pneg %p248
        $region75: #{avg_readout.1} parent=64 // pred_check_branch
          %251 = sbr.rel (%p249) target = $region77
        $region76: #{avg_readout.1} parent=64 // pred_region
          %252 = vst [vmem:[#allocation2] sm:$0xff] 0.0
          %253 = vst [vmem:[#allocation2 + $0x8] sm:$0xff] 0.0
          %vm254 = vcmask 7168
          %255 = vst.msk [vmem:[#allocation3] sm:$0xff] %vm254, 0.0
          %256 = vst.msk [vmem:[#allocation3 + $0x8] sm:$0xff] %vm254, 0.0
        $region77: #{avg_readout.1} parent=64 // pred_fallthru
          _
        %v257 = vld [vmem:[%s211] sm:$0xf]
        %v258 = vld [vmem:[%s211 + $0x4] sm:$0xf]
        %v259 = vld [vmem:[%s219] sm:$0xff]
        %v260 = vld [vmem:[%s219 + $0x8] sm:$0xff]
        %v261 = vld [vmem:[%s219 + $0x10] sm:$0xff]
        %v262 = vld [vmem:[%s219 + $0x18] sm:$0xff]
        %v263 = vld [vmem:[%s219 + $0x20] sm:$0xff]
        %v264 = vld [vmem:[%s219 + $0x28] sm:$0xff]
        %v265 = vld [vmem:[%s219 + $0x30] sm:$0xff]
        %v266 = vld [vmem:[%s219 + $0x38] sm:$0xff]
        %v267 = vld [vmem:[%s219 + $0x40] sm:$0xff]
        %v268 = vld [vmem:[%s219 + $0x48] sm:$0xff]
        %v269 = vld [vmem:[%s219 + $0x50] sm:$0xff]
        %v270 = vld [vmem:[%s219 + $0x58] sm:$0xff]
        %v271 = vld [vmem:[%s219 + $0x60] sm:$0xff]
        %v272 = vld [vmem:[%s219 + $0x68] sm:$0xff]
        %v273 = vld [vmem:[%s219 + $0x70] sm:$0xff]
        %v274 = vld [vmem:[%s219 + $0x78] sm:$0xff]
        %v275 = vld [vmem:[#allocation2] sm:$0xff]
        %v276 = vld [vmem:[#allocation2 + $0x8] sm:$0xff]
        %v279 = vunpack.c.l.b16 %v257
        %v280 = vunpack.c.l.b16 %v258
        %v281 = vpack.c.b16 %v280, %v279
        %283 = vmatprep.subr.mxu0 0.0
        %284 = vmatpush1.msra.mxu0 %v259
        %285 = vmatprep.subr.mxu0 0.0
        %286 = vmatpush1.msra.mxu0 %v260
        %287 = vmatprep.subr.mxu0 0.0
        %288 = vmatpush1.msra.mxu0 %v261
        %289 = vmatprep.subr.mxu0 0.0
        %290 = vmatpush1.msra.mxu0 %v262
        %291 = vmatprep.subr.mxu0 0.0
        %292 = vmatpush1.msra.mxu0 %v263
        %293 = vmatprep.subr.mxu0 0.0
        %294 = vmatpush1.msra.mxu0 %v264
        %295 = vmatprep.subr.mxu0 0.0
        %296 = vmatpush1.msra.mxu0 %v265
        %297 = vmatprep.subr.mxu0 0.0
        %298 = vmatpush1.msra.mxu0 %v266
        %299 = vmatprep.subr.mxu0 0.0
        %300 = vmatpush1.msra.mxu0 %v267
        %301 = vmatprep.subr.mxu0 0.0
        %302 = vmatpush1.msra.mxu0 %v268
        %303 = vmatprep.subr.mxu0 0.0
        %304 = vmatpush1.msra.mxu0 %v269
        %305 = vmatprep.subr.mxu0 0.0
        %306 = vmatpush1.msra.mxu0 %v270
        %307 = vmatprep.subr.mxu0 0.0
        %308 = vmatpush1.msra.mxu0 %v271
        %309 = vmatprep.subr.mxu0 0.0
        %310 = vmatpush1.msra.mxu0 %v272
        %311 = vmatprep.subr.mxu0 0.0
        %312 = vmatpush1.msra.mxu0 %v273
        %313 = vmatprep.subr.mxu0 0.0
        %314 = vmatpush1.msra.mxu0 %v274
        %315 = vmatprep.subr.mxu0 0.0
        %316 = vmatpush1.msra.mxu0 0.0
        %317 = vmatprep.subr.mxu0 0.0
        %318 = vmatpush1.msra.mxu0 0.0
        %319 = vmatprep.subr.mxu0 0.0
        %320 = vmatpush1.msra.mxu0 0.0
        %321 = vmatprep.subr.mxu0 0.0
        %322 = vmatpush1.msra.mxu0 0.0
        %323 = vmatprep.subr.mxu0 0.0
        %324 = vmatpush1.msra.mxu0 0.0
        %325 = vmatprep.subr.mxu0 0.0
        %326 = vmatpush1.msra.mxu0 0.0
        %327 = vmatprep.subr.mxu0 0.0
        %328 = vmatpush1.msra.mxu0 0.0
        %329 = vmatprep.subr.mxu0 0.0
        %330 = vmatpush1.msra.mxu0 0.0
        %331 = vmatprep.subr.mxu0 0.0
        %332 = vmatpush1.msra.mxu0 0.0
        %333 = vmatprep.subr.mxu0 0.0
        %334 = vmatpush1.msra.mxu0 0.0
        %335 = vmatprep.subr.mxu0 0.0
        %336 = vmatpush1.msra.mxu0 0.0
        %337 = vmatprep.subr.mxu0 0.0
        %338 = vmatpush1.msra.mxu0 0.0
        %339 = vmatprep.subr.mxu0 0.0
        %340 = vmatpush1.msra.mxu0 0.0
        %341 = vmatprep.subr.mxu0 0.0
        %342 = vmatpush1.msra.mxu0 0.0
        %343 = vmatprep.subr.mxu0 0.0
        %344 = vmatpush1.msra.mxu0 0.0
        %345 = vmatprep.subr.mxu0 0.0
        %346 = vmatpush1.msra.mxu0 0.0
        %347 = vmatprep.mubr.bf16.mxu0 0
        %348 = vmatmul.mubr.bf16.gmra.mrb[0].mxu0 %v281
        %v349 = vpop.f32.mrb[0].mxu0
        %v350 = vadd.f32 0.0, %v349
        %v351 = vpop.f32.mrb[0].mxu0
        %v352 = vpop.f32.mrb[0].mxu0
        %v353 = vadd.f32 0.0, %v352
        %v354 = vpop.f32.mrb[0].mxu0
        %355 = vdwg.mxu0
        %v356 = vadd.f32 %v275, %v350
        %v357 = vadd.f32 %v276, %v353
        %358 = vst [vmem:[#allocation2] sm:$0xff] %v356
        %359 = vst [vmem:[#allocation2 + $0x8] sm:$0xff] %v357
        %v360 = vld [vmem:[#allocation3] sm:$0xff]
        %v361 = vld [vmem:[#allocation3 + $0x8] sm:$0xff]
        %v362 = vunpack.c.l.bf16 %v257
        %v363 = vunpack.c.l.bf16 %v258
        %364 = vadd.xlane.f32.xlu0 %v362
        %v365 = vpop.xlane.xlu0 %364
        %366 = vadd.xlane.f32.xlu0 %v363
        %v367 = vpop.xlane.xlu0 %366
        %v368 = vadd.f32 %v360, %v365
        %v369 = vadd.f32 %v361, %v367
        %vm370 = vcmask 7168
        %371 = vst.msk [vmem:[#allocation3] sm:$0xff] %vm370, %v368
        %372 = vst.msk [vmem:[#allocation3 + $0x8] sm:$0xff] %vm370, %v369
        %p373 = scmp.eq.s32.totalorder %s24, 3
        // Predicated region
        $region78: #{avg_readout.1} parent=64 // pred_check
          %p374 = pneg %p373
        $region79: #{avg_readout.1} parent=64 // pred_check_branch
          %376 = sbr.rel (%p374) target = $region81
        $region80: #{avg_readout.1} parent=64 // pred_region
          %v377 = vld [vmem:[#allocation3] sm:$0xff]
          %v378 = vld [vmem:[#allocation3 + $0x8] sm:$0xff]
          %v379 = vrcp.pop %v377
          %v380 = vmul.f32 1.0, %v379
          %v381 = vrcp.pop %v378
          %v382 = vmul.f32 1.0, %v381
          %v383 = vld [vmem:[#allocation2] sm:$0xff]
          %v384 = vld [vmem:[#allocation2 + $0x8] sm:$0xff]
          %386 = vset.pattern.permute.xlu0 0
          %387 = vperm.xlu0 %386, %v380
          %v388 = vpop.permute.xlu0 %387
          %391 = vset.pattern.permute.xlu0 0
          %392 = vperm.xlu0 %391, %v382
          %v393 = vpop.permute.xlu0 %392
          %v395 = vmul.f32 %v383, %v388
          %v396 = vmul.f32 %v384, %v393
          %v397 = vmul.f32 %v395, %v395
          %v398 = vmul.f32 %v396, %v396
          %399 = vadd.xlane.f32.xlu0 %v397
          %v400 = vpop.xlane.xlu0 %399
          %401 = vadd.xlane.f32.xlu0 %v398
          %v402 = vpop.xlane.xlu0 %401
          %v403 = vmax.f32 %v400, 1e-24
          %v404 = vmax.f32 %v402, 1e-24
          %v405 = vrsqrt.pop %v403
          %v406 = vrsqrt.pop %v404
          %v407 = vmul.f32 %v395, %v405
          %v408 = vmul.f32 %v396, %v406
          %409 = vst [vmem:[%s243] sm:$0xff] %v407
          %410 = vst [vmem:[%s243 + $0x8] sm:$0xff] %v408
        $region81: #{avg_readout.1} parent=64 // pred_fallthru
          _
        %s411 = sand.u32 %s93, 1
        %s412 = scalar_lea.sflag [#allocation7], %s411
        %s413 = sand.u32 %s93, 1
        %s414 = smul.addr %s413, 16
        %s415 = scalar_lea.vmem [#allocation8], %s414
        // Predicated region
        $region82: #{avg_readout.1} parent=64 // pred_check
          %p416 = pneg %p103
        $region83: #{avg_readout.1} parent=64 // pred_check_branch
          %418 = sbr.rel (%p416) target = $region85
        $region84: #{avg_readout.1} parent=64 // pred_region
          %s419 = smul.u32 2, %s23
          %s421 = ssub.s32 256, 256
          %422 = vsyncadd %s412, %s421
          %s423 = smul.addr %s419, 128
          %s424 = scalar_lea.hbm %s2, %s423
          %s425 = sshll.u32 %s415, 4
          %s426 = int_to_ptr.vmem [resolvable:$true] %s425
          %431 = dma.vmem_to_hbm [thread:$0]  %s426, 256, %s424, %s412, 128, 128, 8
        $region85: #{avg_readout.1} parent=64 // pred_fallthru
          _
      $region65: #{avg_readout.1} parent=5 // pred_fallthru
        _
      %p432 = scmp.le.s32.totalorder 2, %s14
      // Predicated region
      $region86: #{avg_readout.1} parent=5 // pred_check
        %p433 = pneg %p432
      $region87: #{avg_readout.1} parent=5 // pred_check_branch
        %435 = sbr.rel (%p433) target = $region89
      $region88: #{avg_readout.1} parent=5 // pred_region
        %s436 = ssub.s32 %s14, 2
        // Predicated region
        $region90: #{avg_readout.1} parent=88 // pred_check
          %p437 = pneg %p109
        $region91: #{avg_readout.1} parent=88 // pred_check_branch
          %439 = sbr.rel (%p437) target = $region93
        $region92: #{avg_readout.1} parent=88 // pred_region
          %s440 = sand.u32 %s94, 1
          %s441 = scalar_lea.sflag [#allocation7], %s440
          %s442 = sand.u32 %s94, 1
          %s443 = smul.addr %s442, 16
          %s444 = scalar_lea.vmem [#allocation8], %s443
          %445 = dma.done %s441, 256
        $region93: #{avg_readout.1} parent=88 // pred_fallthru
          _
      $region89: #{avg_readout.1} parent=5 // pred_fallthru
        _
    $region6: #{avg_readout.1} parent=1 // loop_footer
      %s18 = sadd.s32 1, %s14
    $region7: #{avg_readout.1} parent=1 // loop_footer_branch
      %13 = sbr.rel target = $region3
    $region8: #{avg_readout.1} parent=1 // loop_exit
      _
    %446 = vsyncpa [#allocation6], 1
    %s447 = scalar_lea.sflag [#allocation6], 1
    %448 = vsyncpa %s447, 1
    %449 = vsyncpa [#allocation7], 1
    %s450 = scalar_lea.sflag [#allocation7], 1
    %451 = vsyncpa %s450, 1

</llo_original>
